<compile_context>
chip_gen: v6e
topology: v6e:2x2x1
jax: 0.10.0
libtpu: 0.0.40
codegen_flags: <defaults>
</compile_context>

<pallas_src>
import functools
import math

import jax
import jax.numpy as jnp
from jax import lax
from jax.experimental import pallas as pl
from jax.experimental.pallas import tpu as pltpu


def _unroll_for(nchunks):
    # Conservative unroll (vreg-spill safe on v5e's single vst slot).
    return True if nchunks <= 8 else 4


def _soft_dice_sums_kernel(logits_ref, targets_ref, inter_ref, m1_ref, m2_ref,
                           *, cw, nchunks, tail_valid, has_tail, unroll):
    """Accumulate lane-wise partial sums of sigmoid(x)*t, sigmoid(x), t.

    Block shapes: logits/targets (row_block, td); outputs (row_block, cw).
    Grid: (row_blocks [parallel], lane_blocks [arbitrary/reduction]).
    """
    k = pl.program_id(1)

    # Reset the resident accumulators at the start of each reduction sweep.
    @pl.when(k == 0)
    def _():
        inter_ref[...] = jnp.zeros_like(inter_ref)
        m1_ref[...] = jnp.zeros_like(m1_ref)
        m2_ref[...] = jnp.zeros_like(m2_ref)

    rows = inter_ref.shape[0]
    zero = jnp.zeros((rows, cw), jnp.float32)

    def sigmoid(x):
        # Single EUP transcendental (tanh) instead of exp + reciprocal.
        return jnp.tanh(x * 0.5) * 0.5 + 0.5

    def body(c, carry):
        inter, m1, m2 = carry
        off = pl.multiple_of(c * cw, cw)
        x = logits_ref[:, pl.ds(off, cw)].astype(jnp.float32)
        t = targets_ref[:, pl.ds(off, cw)].astype(jnp.float32)
        p = sigmoid(x)
        return inter + p * t, m1 + p, m2 + t

    def accumulate(inter, m1, m2):
        inter_ref[...] += inter
        m1_ref[...] += m1
        m2_ref[...] += m2

    if not has_tail:
        inter, m1, m2 = lax.fori_loop(0, nchunks, body, (zero, zero, zero),
                                      unroll=unroll)
        accumulate(inter, m1, m2)
        return

    is_tail = k == pl.num_programs(1) - 1

    @pl.when(jnp.logical_not(is_tail))
    def _():
        inter, m1, m2 = lax.fori_loop(0, nchunks, body, (zero, zero, zero),
                                      unroll=unroll)
        accumulate(inter, m1, m2)

    @pl.when(is_tail)
    def _():
        # Only the tail lane block pays for masking: fully-valid chunks run
        # the unmasked body, the one partial chunk is masked, and chunks past
        # the valid width are never loaded at all.
        full = tail_valid // cw
        rem = tail_valid - full * cw
        carry = (zero, zero, zero)
        if full:
            carry = lax.fori_loop(0, full, body, carry,
                                  unroll=_unroll_for(full))
        if rem:
            inter, m1, m2 = carry
            off = full * cw
            lane = lax.broadcasted_iota(jnp.int32, (rows, cw), 1)
            valid = lane < rem                    # compile-time threshold
            x = logits_ref[:, pl.ds(off, cw)].astype(jnp.float32)
            t = targets_ref[:, pl.ds(off, cw)].astype(jnp.float32)
            p = jnp.where(valid, sigmoid(x), 0.0)
            t = jnp.where(valid, t, 0.0)
            carry = (inter + p * t, m1 + p, m2 + t)
        accumulate(*carry)


def _sublane_pack(*dtypes):
    """Rows per sublane group for the narrowest streamed dtype (8/16/32)."""
    min_isize = min(jnp.dtype(dt).itemsize for dt in dtypes)
    return max(8, 32 // min_isize)


def _choose_row_split(n, d, pack):
    """Pick r so each sample's D features become r rows of ceil(D/r) lanes.

    Prefers a divisor of D (no padding) with n*r % pack == 0 and, when
    possible, n*r >= 2*pack (>= 2 row blocks -> v7x megacore sharding).
    Falls back to a padded split when no suitable divisor exists.
    Returns (r, need_pad).
    """
    first = None
    for r in range(1, min(d, 8 * pack) + 1):
        if d % r:
            continue
        if (n * r) % pack:
            continue
        if first is None:
            first = r
        if n * r >= 2 * pack:
            return r, False
    if first is not None:
        return first, False
    # No divisor fills the sublanes: pad the per-sample tail instead of
    # collapsing to a fraction of a sublane group (4x VPU/DMA waste).
    step = pack // math.gcd(n, pack)
    r = step
    while n * r < 2 * pack:
        r += step
    return r, True


def soft_dice_loss(logits, targets, smooth=1.0, *, max_td=131072,
                   block_bytes=4 << 20):
    """logits/targets: (N, ...) arrays.  Returns the scalar f32 dice loss."""
    n = logits.shape[0]
    d = math.prod(logits.shape[1:])

    isize_l = jnp.dtype(logits.dtype).itemsize
    isize_t = jnp.dtype(targets.dtype).itemsize
    pack = _sublane_pack(logits.dtype, targets.dtype)

    # Sublane densification: view each sample's D features as r rows.
    r, _ = _choose_row_split(n, d, pack)
    d2 = -(-d // r)                        # ceil(d / r)
    rows = n * r

    logits2d = logits.reshape(n, d)
    targets2d = targets.reshape(n, d)
    pad = r * d2 - d
    if pad:
        # Neutral padding: sigmoid(-1e30) == 0 and target == 0 contribute
        # nothing to any of the three sums, so no extra in-kernel mask.
        logits2d = jnp.pad(logits2d, ((0, 0), (0, pad)),
                           constant_values=-1e30)
        targets2d = jnp.pad(targets2d, ((0, 0), (0, pad)), constant_values=0)
    logits2d = logits2d.reshape(rows, d2)
    targets2d = targets2d.reshape(rows, d2)

    row_block = pack if rows % pack == 0 else rows
    n_row_blocks = rows // row_block

    # Reduction tile width: ~block_bytes of the widest input per grid step
    # (x 2 inputs x 2 pipeline buffers), multiple of 128, never wider than d2.
    isize = max(isize_l, isize_t)
    if d2 >= 128:
        td_budget = max(128, block_bytes // (row_block * isize))
        td = max(128, (min(max_td, td_budget, d2) // 128) * 128)
    else:
        td = d2                            # tiny problem: single full block
    cw = min(td, 128)                      # lane-accumulator (vreg) width
    nchunks = td // cw
    n_lane_blocks = pl.cdiv(d2, td)
    tail_valid = d2 - (n_lane_blocks - 1) * td
    has_tail = tail_valid != td            # ragged last lane block?

    kernel = functools.partial(
        _soft_dice_sums_kernel, cw=cw, nchunks=nchunks,
        tail_valid=tail_valid, has_tail=has_tail,
        unroll=_unroll_for(nchunks))

    part_shape = jax.ShapeDtypeStruct((rows, cw), jnp.float32)
    part_spec = pl.BlockSpec((row_block, cw), lambda p, k: (p, 0))
    in_spec = pl.BlockSpec((row_block, td), lambda p, k: (p, k))

    # VMEM limit from the actual footprint (+ headroom), not a blanket 32 MiB;
    # keeps well under v7x's 64 MiB physical VMEM even at 4 MiB input blocks.
    in_block_bytes = row_block * td * (isize_l + isize_t)
    out_block_bytes = 3 * row_block * cw * 4
    vmem_limit = 2 * (in_block_bytes + out_block_bytes) + (4 << 20)
    vmem_limit = int(min(max(vmem_limit, 16 << 20), 64 << 20))

    inter_p, m1_p, m2_p = pl.pallas_call(
        kernel,
        out_shape=(part_shape, part_shape, part_shape),
        grid_spec=pltpu.PrefetchScalarGridSpec(
            num_scalar_prefetch=0,
            grid=(n_row_blocks, n_lane_blocks),
            in_specs=[in_spec, in_spec],
            out_specs=(part_spec, part_spec, part_spec),
        ),
        compiler_params=pltpu.CompilerParams(
            dimension_semantics=("parallel", "arbitrary"),
            vmem_limit_bytes=vmem_limit),
    )(logits2d, targets2d)

    # Tiny epilogue in plain JAX: fold lane partials and the r row-splits back
    # to per-sample sums, then the dice score and scalar loss.
    inter = inter_p.sum(axis=1).reshape(n, r).sum(axis=1)
    m1 = m1_p.sum(axis=1).reshape(n, r).sum(axis=1)
    m2 = m2_p.sum(axis=1).reshape(n, r).sum(axis=1)
    score = 2.0 * (inter + smooth) / (m1 + m2 + smooth)
    return 1.0 - jnp.sum(score) / n


def _reference_soft_dice(logits, targets, smooth=1.0):
    n = logits.shape[0]
    probs = jax.nn.sigmoid(logits.astype(jnp.float32)).reshape(n, -1)
    t = targets.astype(jnp.float32).reshape(n, -1)
    inter = jnp.sum(probs * t, axis=1)
    score = 2.0 * (inter + smooth) / (jnp.sum(probs, axis=1) +
                                      jnp.sum(t, axis=1) + smooth)
    return 1.0 - jnp.sum(score) / n


if __name__ == "__main__":
    key = jax.random.PRNGKey(0)
    k1, k2, k3, k4 = jax.random.split(key, 4)

    # Primary test: UNet-style segmentation head, N=2, C=4, 16x16.
    logits = jax.random.normal(k1, (2, 4, 16, 16), dtype=jnp.float32)
    targets = (jax.random.uniform(k2, (2, 4, 16, 16)) > 0.5).astype(jnp.float32)
    loss = jax.block_until_ready(soft_dice_loss(logits, targets, smooth=1.0))
    ref = _reference_soft_dice(logits, targets, smooth=1.0)
    assert jnp.allclose(loss, ref, atol=1e-5, rtol=1e-5), (loss, ref)

    # Secondary test: awkward feature count (exercises the padded row split,
    # full-sublane packing and the two-row-block parallel axis).
    logits2 = jax.random.normal(k3, (2, 3, 11, 13), dtype=jnp.float32)
    targets2 = (jax.random.uniform(k4, (2, 3, 11, 13)) > 0.5).astype(jnp.float32)
    loss2 = jax.block_until_ready(soft_dice_loss(logits2, targets2, smooth=1.0))
    ref2 = _reference_soft_dice(logits2, targets2, smooth=1.0)
    assert jnp.allclose(loss2, ref2, atol=1e-5, rtol=1e-5), (loss2, ref2)

    print("KERNEL_OK")
</pallas_src>

<mosaic_0001>
module attributes {stable_mosaic.version = 11 : i64} {
  func.func @_soft_dice_sums_kernel(%arg0: i32, %arg1: i32, %arg2: memref<8x128xf32, #tpu.memory_space<vmem>>, %arg3: memref<8x128xf32, #tpu.memory_space<vmem>>, %arg4: memref<8x128xf32, #tpu.memory_space<vmem>>, %arg5: memref<8x128xf32, #tpu.memory_space<vmem>>, %arg6: memref<8x128xf32, #tpu.memory_space<vmem>>) attributes {dimension_semantics = [#tpu.dimension_semantics<parallel>, #tpu.dimension_semantics<arbitrary>], iteration_bounds = array<i64: 2, 1>, scalar_prefetch = 0 : i64, scratch_operands = 0 : i64, tpu.core_type = #tpu.core_type<tc>, window_params = [{transform_indices = @transform_0, window_bounds = array<i64: 8, 128>}, {transform_indices = @transform_1, window_bounds = array<i64: 8, 128>}, {transform_indices = @transform_2, window_bounds = array<i64: 8, 128>}, {transform_indices = @transform_3, window_bounds = array<i64: 8, 128>}, {transform_indices = @transform_4, window_bounds = array<i64: 8, 128>}]} {
    %c0_i32 = arith.constant 0 : i32
    %0 = arith.cmpi eq, %arg1, %c0_i32 : i32
    %1 = arith.extui %0 : i1 to i32
    %c0_i32_0 = arith.constant 0 : i32
    %2 = arith.cmpi ne, %1, %c0_i32_0 : i32
    scf.if %2 {
      %cst_18 = arith.constant 0.000000e+00 : f32
      %30 = vector.broadcast %cst_18 : f32 to vector<8x128xf32>
      %c0_19 = arith.constant 0 : index
      %c0_20 = arith.constant 0 : index
      %31 = vector.load %arg4[%c0_19, %c0_20] : memref<8x128xf32, #tpu.memory_space<vmem>>, vector<8x128xf32>
      tpu.vector_store %arg4[%c0_19, %c0_20], %30 {strides = array<i32>} : memref<8x128xf32, #tpu.memory_space<vmem>>, vector<8x128xf32>,
      %cst_21 = arith.constant 0.000000e+00 : f32
      %32 = vector.broadcast %cst_21 : f32 to vector<8x128xf32>
      %c0_22 = arith.constant 0 : index
      %c0_23 = arith.constant 0 : index
      %33 = vector.load %arg5[%c0_22, %c0_23] : memref<8x128xf32, #tpu.memory_space<vmem>>, vector<8x128xf32>
      tpu.vector_store %arg5[%c0_22, %c0_23], %32 {strides = array<i32>} : memref<8x128xf32, #tpu.memory_space<vmem>>, vector<8x128xf32>,
      %cst_24 = arith.constant 0.000000e+00 : f32
      %34 = vector.broadcast %cst_24 : f32 to vector<8x128xf32>
      %c0_25 = arith.constant 0 : index
      %c0_26 = arith.constant 0 : index
      %35 = vector.load %arg6[%c0_25, %c0_26] : memref<8x128xf32, #tpu.memory_space<vmem>>, vector<8x128xf32>
      tpu.vector_store %arg6[%c0_25, %c0_26], %34 {strides = array<i32>} : memref<8x128xf32, #tpu.memory_space<vmem>>, vector<8x128xf32>,
    } else {
    }
    %cst = arith.constant 0.000000e+00 : f32
    %3 = vector.broadcast %cst : f32 to vector<8x128xf32>
    %c0_i32_1 = arith.constant 0 : i32
    %c128_i32 = arith.constant 128 : i32
    %4 = arith.muli %c0_i32_1, %c128_i32 : i32
    %5 = tpu.assume_multiple %4, 128 : i32
    %c0 = arith.constant 0 : index
    %6 = arith.index_cast %5 : i32 to index
    %7 = vector.load %arg2[%c0, %6] : memref<8x128xf32, #tpu.memory_space<vmem>>, vector<8x128xf32>
    %c0_2 = arith.constant 0 : index
    %8 = arith.index_cast %5 : i32 to index
    %9 = vector.load %arg3[%c0_2, %8] : memref<8x128xf32, #tpu.memory_space<vmem>>, vector<8x128xf32>
    %cst_3 = arith.constant 5.000000e-01 : f32
    %10 = vector.broadcast %cst_3 : f32 to vector<8x128xf32>
    %11 = arith.mulf %7, %10 : vector<8x128xf32>
    %12 = math.tanh %11 : vector<8x128xf32>
    %cst_4 = arith.constant 5.000000e-01 : f32
    %13 = vector.broadcast %cst_4 : f32 to vector<8x128xf32>
    %14 = arith.mulf %12, %13 : vector<8x128xf32>
    %cst_5 = arith.constant 5.000000e-01 : f32
    %15 = vector.broadcast %cst_5 : f32 to vector<8x128xf32>
    %16 = arith.addf %14, %15 : vector<8x128xf32>
    %17 = arith.mulf %16, %9 : vector<8x128xf32>
    %18 = arith.addf %3, %17 : vector<8x128xf32>
    %19 = arith.addf %3, %16 : vector<8x128xf32>
    %20 = arith.addf %3, %9 : vector<8x128xf32>
    %c1_i32 = arith.constant 1 : i32
    %c0_6 = arith.constant 0 : index
    %c0_7 = arith.constant 0 : index
    %21 = vector.load %arg4[%c0_6, %c0_7] : memref<8x128xf32, #tpu.memory_space<vmem>>, vector<8x128xf32>
    %22 = arith.addf %21, %18 : vector<8x128xf32>
    %c0_8 = arith.constant 0 : index
    %c0_9 = arith.constant 0 : index
    %23 = vector.load %arg4[%c0_8, %c0_9] : memref<8x128xf32, #tpu.memory_space<vmem>>, vector<8x128xf32>
    tpu.vector_store %arg4[%c0_8, %c0_9], %22 {strides = array<i32>} : memref<8x128xf32, #tpu.memory_space<vmem>>, vector<8x128xf32>,
    %c0_10 = arith.constant 0 : index
    %c0_11 = arith.constant 0 : index
    %24 = vector.load %arg5[%c0_10, %c0_11] : memref<8x128xf32, #tpu.memory_space<vmem>>, vector<8x128xf32>
    %25 = arith.addf %24, %19 : vector<8x128xf32>
    %c0_12 = arith.constant 0 : index
    %c0_13 = arith.constant 0 : index
    %26 = vector.load %arg5[%c0_12, %c0_13] : memref<8x128xf32, #tpu.memory_space<vmem>>, vector<8x128xf32>
    tpu.vector_store %arg5[%c0_12, %c0_13], %25 {strides = array<i32>} : memref<8x128xf32, #tpu.memory_space<vmem>>, vector<8x128xf32>,
    %c0_14 = arith.constant 0 : index
    %c0_15 = arith.constant 0 : index
    %27 = vector.load %arg6[%c0_14, %c0_15] : memref<8x128xf32, #tpu.memory_space<vmem>>, vector<8x128xf32>
    %28 = arith.addf %27, %20 : vector<8x128xf32>
    %c0_16 = arith.constant 0 : index
    %c0_17 = arith.constant 0 : index
    %29 = vector.load %arg6[%c0_16, %c0_17] : memref<8x128xf32, #tpu.memory_space<vmem>>, vector<8x128xf32>
    tpu.vector_store %arg6[%c0_16, %c0_17], %28 {strides = array<i32>} : memref<8x128xf32, #tpu.memory_space<vmem>>, vector<8x128xf32>,
    return
  }
  func.func @transform_0(%arg0: i32, %arg1: i32) -> (i32, i32) {
    %c0_i32 = arith.constant 0 : i32
    return %arg0, %arg1 : i32, i32
  }
  func.func @transform_1(%arg0: i32, %arg1: i32) -> (i32, i32) {
    %c0_i32 = arith.constant 0 : i32
    return %arg0, %arg1 : i32, i32
  }
  func.func @transform_2(%arg0: i32, %arg1: i32) -> (i32, i32) {
    %c0_i32 = arith.constant 0 : i32
    %c0_i32_0 = arith.constant 0 : i32
    return %arg0, %c0_i32 : i32, i32
  }
  func.func @transform_3(%arg0: i32, %arg1: i32) -> (i32, i32) {
    %c0_i32 = arith.constant 0 : i32
    %c0_i32_0 = arith.constant 0 : i32
    return %arg0, %c0_i32 : i32, i32
  }
  func.func @transform_4(%arg0: i32, %arg1: i32) -> (i32, i32) {
    %c0_i32 = arith.constant 0 : i32
    %c0_i32_0 = arith.constant 0 : i32
    return %arg0, %c0_i32 : i32, i32
  }
}

</mosaic_0001>

<llo_original>
// kernel: tpu_custom_call.1
$region0: #{tpu_custom_call.1}
  #allocation0 [shape = 'u32[]', space=smem, size = 0x4, offset = 0x4, fixed_abs, tag = 'smem constant byte address 0x4 - core index']
  #allocation1 [shape = 'u32[144,128]{1,0:T(1,128)}', space=vmem, size = 0x12000, scoped, tag = 'internal scratch']
  %s0 = inlined_call_operand.hbm [shape: f32[16,128], index: 0, kind: input, shape index: {}]
  %s1 = inlined_call_operand.hbm [shape: f32[16,128], index: 1, kind: input, shape index: {}]
  %s2 = inlined_call_operand.hbm [shape: f32[16,128], index: 2, kind: output, shape index: {0}]
  %s3 = inlined_call_operand.hbm [shape: f32[16,128], index: 3, kind: output, shape index: {1}]
  %s4 = inlined_call_operand.hbm [shape: f32[16,128], index: 4, kind: output, shape index: {2}]
  %5 = xla_tuple %s2, %s3, %s4
  %s6 = sld [smem:[#allocation0]]
  $region69: #{tpu_custom_call.1} parent=0
    _
  %s8 = ssub.s32 1, %s6
  %s9 = scalar_select 0, %s8, %s6
  $region1: #{tpu_custom_call.1} parent=0
    #allocation2 [shape = 'u8[8192]{0}', space=vmem, size = 0x2000, scoped, tag = 'input window, operand 0']
    #allocation3 [shape = 's32[2]{0}', space=sflag, size = 0x8, scoped, tag = 'scoped memory for tpu_custom_call.1']
    #allocation4 [shape = 's32[2]{0}', space=sflag, size = 0x8, scoped, tag = 'scoped memory for tpu_custom_call.1']
    #allocation5 [shape = 'u8[8192]{0}', space=vmem, size = 0x2000, scoped, tag = 'input window, operand 1']
    #allocation6 [shape = 's32[2]{0}', space=sflag, size = 0x8, scoped, tag = 'scoped memory for tpu_custom_call.1']
    #allocation7 [shape = 'u8[8192]{0}', space=vmem, size = 0x2000, scoped, tag = 'output window, operand 0']
    #allocation8 [shape = 'u8[8192]{0}', space=vmem, size = 0x2000, scoped, tag = 'output window, operand 1']
    #allocation9 [shape = 's32[2]{0}', space=sflag, size = 0x8, scoped, tag = 'scoped memory for tpu_custom_call.1']
    #allocation10 [shape = 'u8[8192]{0}', space=vmem, size = 0x2000, scoped, tag = 'output window, operand 2']
    %10 = vsyncpa [#allocation3], 0
    %s11 = scalar_lea.sflag [#allocation3], 1
    %12 = vsyncpa %s11, 0
    %13 = vsyncpa [#allocation6], 0
    %s14 = scalar_lea.sflag [#allocation6], 1
    %15 = vsyncpa %s14, 0
    %16 = vsyncpa [#allocation4], 0
    %s17 = scalar_lea.sflag [#allocation4], 1
    %18 = vsyncpa %s17, 0
    %19 = vsyncpa [#allocation9], 0
    %s20 = scalar_lea.sflag [#allocation9], 1
    %21 = vsyncpa %s20, 0
    loop: start=0, step=1, limit=4
    $region2: #{tpu_custom_call.1} parent=1 // loop_pre_header
      _
    $region3: #{tpu_custom_call.1} parent=1 // loop_header
      %s23 = sphi 0, %s27
      %p24 = scmp.ge.s32.totalorder %s23, 4
      %s30 = sphi 0, %s42
      %s31 = sphi 0, %s38
      %s32 = sphi 0, %s30
      %s33 = sphi 0, %s31
      %s34 = sphi 0, %s32
      %s35 = sphi 0, %s33
      %s47 = sphi 0, %s49
      %s50 = sphi 0, %s47
      %s51 = sphi 0, %s50
      %s67 = sphi 0, %s51
      %s75 = sphi 0, %s77
      %s78 = sphi 0, %s75
      %s79 = sphi 0, %s78
      %s95 = sphi 0, %s79
      %s101 = sphi 0, %s103
      %s104 = sphi 0, %s101
      %s105 = sphi 0, %s104
      %s121 = sphi 0, %s105
      %s127 = sphi 0, %s129
      %s130 = sphi 0, %s127
      %s131 = sphi 0, %s130
      %s147 = sphi 0, %s131
      %s153 = sphi 0, %s155
      %s156 = sphi 0, %s153
      %s157 = sphi 0, %s156
      %s173 = sphi 0, %s157
    $region4: #{tpu_custom_call.1} parent=1 // loop_header_branch
      %26 = sbr.rel (%p24) target = $region8
    $region5: #{tpu_custom_call.1} parent=1 // loop_body
      %s28 = ssub.s32 %s23, 1
      %s29 = ssub.s32 %s23, 2
      %s36 = sadd.s32 1, %s31
      %p37 = scmp.ge.s32.totalorder %s36, 1
      %s38 = scalar_select %p37, 0, %s36
      %s39 = sadd.s32 1, %s30
      %s40 = scalar_select %p37, %s39, %s30
      %p41 = scmp.ge.s32.totalorder %s40, 2
      %s42 = scalar_select %p41, 0, %s40
      %s43 = ssub.s32 %s30, %s42
      %s44 = ssub.s32 %s31, %s38
      %s45 = sor.u32 %s43, %s44
      %p46 = scmp.eq.s32.totalorder %s45, 0
      %s48 = sadd.s32 %s47, 1
      %s49 = scalar_select %p46, %s47, %s48
      %p52 = pneg %p46
      %p53 = scmp.eq.s32.totalorder %s23, 1
      %p54 = por %p52, %p53
      %p55 = scmp.ne.s32.totalorder %s47, %s50
      %p56 = scmp.eq.s32.totalorder %s23, 0
      %p57 = por %p55, %p56
      %p58 = scmp.ne.s32.totalorder %s47, %s50
      %p59 = scmp.eq.s32.totalorder %s28, 1
      %p60 = por %p58, %p59
      %p61 = scmp.ne.s32.totalorder %s50, %s51
      %p62 = scmp.eq.s32.totalorder %s28, 0
      %p63 = por %p61, %p62
      %p64 = scmp.ne.s32.totalorder %s50, %s51
      %p65 = scmp.eq.s32.totalorder %s29, 1
      %p66 = por %p64, %p65
      %p68 = scmp.ne.s32.totalorder %s51, %s67
      %p69 = scmp.eq.s32.totalorder %s29, 0
      %p70 = por %p68, %p69
      %s71 = ssub.s32 %s30, %s42
      %s72 = ssub.s32 %s31, %s38
      %s73 = sor.u32 %s71, %s72
      %p74 = scmp.eq.s32.totalorder %s73, 0
      %s76 = sadd.s32 %s75, 1
      %s77 = scalar_select %p74, %s75, %s76
      %p80 = pneg %p74
      %p81 = scmp.eq.s32.totalorder %s23, 1
      %p82 = por %p80, %p81
      %p83 = scmp.ne.s32.totalorder %s75, %s78
      %p84 = scmp.eq.s32.totalorder %s23, 0
      %p85 = por %p83, %p84
      %p86 = scmp.ne.s32.totalorder %s75, %s78
      %p87 = scmp.eq.s32.totalorder %s28, 1
      %p88 = por %p86, %p87
      %p89 = scmp.ne.s32.totalorder %s78, %s79
      %p90 = scmp.eq.s32.totalorder %s28, 0
      %p91 = por %p89, %p90
      %p92 = scmp.ne.s32.totalorder %s78, %s79
      %p93 = scmp.eq.s32.totalorder %s29, 1
      %p94 = por %p92, %p93
      %p96 = scmp.ne.s32.totalorder %s79, %s95
      %p97 = scmp.eq.s32.totalorder %s29, 0
      %p98 = por %p96, %p97
      %s99 = ssub.s32 %s30, %s42
      %p100 = scmp.eq.s32.totalorder %s99, 0
      %s102 = sadd.s32 %s101, 1
      %s103 = scalar_select %p100, %s101, %s102
      %p106 = pneg %p100
      %p107 = scmp.eq.s32.totalorder %s23, 1
      %p108 = por %p106, %p107
      %p109 = scmp.ne.s32.totalorder %s101, %s104
      %p110 = scmp.eq.s32.totalorder %s23, 0
      %p111 = por %p109, %p110
      %p112 = scmp.ne.s32.totalorder %s101, %s104
      %p113 = scmp.eq.s32.totalorder %s28, 1
      %p114 = por %p112, %p113
      %p115 = scmp.ne.s32.totalorder %s104, %s105
      %p116 = scmp.eq.s32.totalorder %s28, 0
      %p117 = por %p115, %p116
      %p118 = scmp.ne.s32.totalorder %s104, %s105
      %p119 = scmp.eq.s32.totalorder %s29, 1
      %p120 = por %p118, %p119
      %p122 = scmp.ne.s32.totalorder %s105, %s121
      %p123 = scmp.eq.s32.totalorder %s29, 0
      %p124 = por %p122, %p123
      %s125 = ssub.s32 %s30, %s42
      %p126 = scmp.eq.s32.totalorder %s125, 0
      %s128 = sadd.s32 %s127, 1
      %s129 = scalar_select %p126, %s127, %s128
      %p132 = pneg %p126
      %p133 = scmp.eq.s32.totalorder %s23, 1
      %p134 = por %p132, %p133
      %p135 = scmp.ne.s32.totalorder %s127, %s130
      %p136 = scmp.eq.s32.totalorder %s23, 0
      %p137 = por %p135, %p136
      %p138 = scmp.ne.s32.totalorder %s127, %s130
      %p139 = scmp.eq.s32.totalorder %s28, 1
      %p140 = por %p138, %p139
      %p141 = scmp.ne.s32.totalorder %s130, %s131
      %p142 = scmp.eq.s32.totalorder %s28, 0
      %p143 = por %p141, %p142
      %p144 = scmp.ne.s32.totalorder %s130, %s131
      %p145 = scmp.eq.s32.totalorder %s29, 1
      %p146 = por %p144, %p145
      %p148 = scmp.ne.s32.totalorder %s131, %s147
      %p149 = scmp.eq.s32.totalorder %s29, 0
      %p150 = por %p148, %p149
      %s151 = ssub.s32 %s30, %s42
      %p152 = scmp.eq.s32.totalorder %s151, 0
      %s154 = sadd.s32 %s153, 1
      %s155 = scalar_select %p152, %s153, %s154
      %p158 = pneg %p152
      %p159 = scmp.eq.s32.totalorder %s23, 1
      %p160 = por %p158, %p159
      %p161 = scmp.ne.s32.totalorder %s153, %s156
      %p162 = scmp.eq.s32.totalorder %s23, 0
      %p163 = por %p161, %p162
      %p164 = scmp.ne.s32.totalorder %s153, %s156
      %p165 = scmp.eq.s32.totalorder %s28, 1
      %p166 = por %p164, %p165
      %p167 = scmp.ne.s32.totalorder %s156, %s157
      %p168 = scmp.eq.s32.totalorder %s28, 0
      %p169 = por %p167, %p168
      %p170 = scmp.ne.s32.totalorder %s156, %s157
      %p171 = scmp.eq.s32.totalorder %s29, 1
      %p172 = por %p170, %p171
      %p174 = scmp.ne.s32.totalorder %s157, %s173
      %p175 = scmp.eq.s32.totalorder %s29, 0
      %p176 = por %p174, %p175
      %p177 = scmp.le.s32.totalorder 1, %s23
      %p178 = scmp.lt.s32.totalorder %s23, 3
      %p179 = pnand %p177, %p178
      %p180 = pneg %p179
      // Predicated region
      $region9: #{tpu_custom_call.1} parent=5 // pred_check
        _
      $region10: #{tpu_custom_call.1} parent=5 // pred_check_branch
        %182 = sbr.rel (%p179) target = $region12
      $region11: #{tpu_custom_call.1} parent=5 // pred_region
        %s183 = ssub.s32 %s23, 1
      $region12: #{tpu_custom_call.1} parent=5 // pred_fallthru
        _
      %p184 = scmp.lt.s32.totalorder %s23, 2
      // Predicated region
      $region13: #{tpu_custom_call.1} parent=5 // pred_check
        %p185 = pneg %p184
      $region14: #{tpu_custom_call.1} parent=5 // pred_check_branch
        %187 = sbr.rel (%p185) target = $region16
      $region15: #{tpu_custom_call.1} parent=5 // pred_region
        // Predicated region
        $region17: #{tpu_custom_call.1} parent=15 // pred_check
          %p188 = pneg %p57
        $region18: #{tpu_custom_call.1} parent=15 // pred_check_branch
          %190 = sbr.rel (%p188) target = $region20
        $region19: #{tpu_custom_call.1} parent=15 // pred_region
          %s191 = sand.u32 %s47, 1
          %s192 = scalar_lea.sflag [#allocation3], %s191
          %s193 = sand.u32 %s47, 1
          %s194 = smul.addr %s193, 8
          %s195 = scalar_lea.vmem [#allocation2], %s194
          %s197 = ssub.s32 128, 128
          %198 = vsyncadd %s192, %s197
          %s199 = sadd.s32 %s31, %s30
          %s200 = smul.addr %s199, 128
          %s201 = scalar_lea.hbm %s0, %s200
          %s203 = sshll.u32 %s195, 4
          %s204 = int_to_ptr.vmem [resolvable:$true] %s203
          %206 = dma.hbm_to_vmem [thread:$0]  %s201, 128, %s204, %s192
        $region20: #{tpu_custom_call.1} parent=15 // pred_fallthru
          _
        // Predicated region
        $region21: #{tpu_custom_call.1} parent=15 // pred_check
          %p207 = pneg %p85
        $region22: #{tpu_custom_call.1} parent=15 // pred_check_branch
          %209 = sbr.rel (%p207) target = $region24
        $region23: #{tpu_custom_call.1} parent=15 // pred_region
          %s210 = sand.u32 %s75, 1
          %s211 = scalar_lea.sflag [#allocation6], %s210
          %s212 = sand.u32 %s75, 1
          %s213 = smul.addr %s212, 8
          %s214 = scalar_lea.vmem [#allocation5], %s213
          %s216 = ssub.s32 128, 128
          %217 = vsyncadd %s211, %s216
          %s218 = sadd.s32 %s31, %s30
          %s219 = smul.addr %s218, 128
          %s220 = scalar_lea.hbm %s1, %s219
          %s222 = sshll.u32 %s214, 4
          %s223 = int_to_ptr.vmem [resolvable:$true] %s222
          %225 = dma.hbm_to_vmem [thread:$0]  %s220, 128, %s223, %s211
        $region24: #{tpu_custom_call.1} parent=15 // pred_fallthru
          _
      $region16: #{tpu_custom_call.1} parent=5 // pred_fallthru
        _
      %p226 = scmp.le.s32.totalorder 1, %s23
      %p227 = scmp.lt.s32.totalorder %s23, 3
      %p228 = pnand %p226, %p227
      %p229 = pneg %p228
      // Predicated region
      $region25: #{tpu_custom_call.1} parent=5 // pred_check
        _
      $region26: #{tpu_custom_call.1} parent=5 // pred_check_branch
        %231 = sbr.rel (%p228) target = $region28
      $region27: #{tpu_custom_call.1} parent=5 // pred_region
        %s232 = ssub.s32 %s23, 1
        %s233 = sand.u32 %s50, 1
        %s234 = scalar_lea.sflag [#allocation3], %s233
        %s235 = sand.u32 %s50, 1
        %s236 = smul.addr %s235, 8
        %s237 = scalar_lea.vmem [#allocation2], %s236
        // Predicated region
        $region29: #{tpu_custom_call.1} parent=27 // pred_check
          %p238 = pneg %p63
        $region30: #{tpu_custom_call.1} parent=27 // pred_check_branch
          %240 = sbr.rel (%p238) target = $region32
        $region31: #{tpu_custom_call.1} parent=27 // pred_region
          %241 = dma.done %s234, 128
        $region32: #{tpu_custom_call.1} parent=27 // pred_fallthru
          _
        %s242 = sand.u32 %s78, 1
        %s243 = scalar_lea.sflag [#allocation6], %s242
        %s244 = sand.u32 %s78, 1
        %s245 = smul.addr %s244, 8
        %s246 = scalar_lea.vmem [#allocation5], %s245
        // Predicated region
        $region33: #{tpu_custom_call.1} parent=27 // pred_check
          %p247 = pneg %p91
        $region34: #{tpu_custom_call.1} parent=27 // pred_check_branch
          %249 = sbr.rel (%p247) target = $region36
        $region35: #{tpu_custom_call.1} parent=27 // pred_region
          %250 = dma.done %s243, 128
        $region36: #{tpu_custom_call.1} parent=27 // pred_fallthru
          _
        %s251 = sand.u32 %s50, 1
        %s252 = scalar_lea.sflag [#allocation3], %s251
        %s253 = sand.u32 %s50, 1
        %s254 = smul.addr %s253, 8
        %s255 = scalar_lea.vmem [#allocation2], %s254
        %p256 = pneg %p63
        %p257 = pneg %p60
        %s258 = sand.u32 %s78, 1
        %s259 = scalar_lea.sflag [#allocation6], %s258
        %s260 = sand.u32 %s78, 1
        %s261 = smul.addr %s260, 8
        %s262 = scalar_lea.vmem [#allocation5], %s261
        %p263 = pneg %p91
        %p264 = pneg %p88
        %p265 = pneg %p117
        %p266 = pneg %p114
        %s267 = sand.u32 %s104, 1
        %s268 = scalar_lea.sflag [#allocation4], %s267
        %s269 = sand.u32 %s104, 1
        %s270 = smul.addr %s269, 8
        %s271 = scalar_lea.vmem [#allocation7], %s270
        %p272 = pneg %p143
        %p273 = pneg %p140
        %s274 = sand.u32 %s28, 1
        %s275 = scalar_lea.sflag [#allocation9], %s274
        %s276 = sand.u32 %s130, 1
        %s277 = smul.addr %s276, 8
        %s278 = scalar_lea.vmem [#allocation8], %s277
        %p279 = pneg %p169
        %p280 = pneg %p166
        %s281 = sand.u32 %s28, 1
        %s282 = scalar_lea.sflag [#allocation9], %s281
        %s283 = sand.u32 %s156, 1
        %s284 = smul.addr %s283, 8
        %s285 = scalar_lea.vmem [#allocation10], %s284
        %p286 = scmp.eq.s32.totalorder %s33, 0
        // Predicated region
        $region37: #{tpu_custom_call.1} parent=27 // pred_check
          %p287 = pneg %p286
        $region38: #{tpu_custom_call.1} parent=27 // pred_check_branch
          %289 = sbr.rel (%p287) target = $region40
        $region39: #{tpu_custom_call.1} parent=27 // pred_region
          %290 = vst [vmem:[%s271] sm:$0xff] 0.0
          %291 = vst [vmem:[%s278] sm:$0xff] 0.0
          %292 = vst [vmem:[%s285] sm:$0xff] 0.0
        $region40: #{tpu_custom_call.1} parent=27 // pred_fallthru
          _
        %v293 = vld [vmem:[%s237] sm:$0xff]
        %v294 = vld [vmem:[%s246] sm:$0xff]
        %v295 = vmul.f32 %v293, 0.5
        %v296 = vtanh.pop %v295
        %v297 = vmul.f32 %v296, 0.5
        %v298 = vadd.f32 %v297, 0.5
        %v299 = vmul.f32 %v298, %v294
        %v300 = vadd.f32 %v299, 0.0
        %v301 = vadd.f32 %v298, 0.0
        %v302 = vadd.f32 %v294, 0.0
        %v303 = vld [vmem:[%s271] sm:$0xff]
        %v304 = vadd.f32 %v303, %v300
        %305 = vst [vmem:[%s271] sm:$0xff] %v304
        %v306 = vld [vmem:[%s278] sm:$0xff]
        %v307 = vadd.f32 %v306, %v301
        %308 = vst [vmem:[%s278] sm:$0xff] %v307
        %v309 = vld [vmem:[%s285] sm:$0xff]
        %v310 = vadd.f32 %v309, %v302
        %311 = vst [vmem:[%s285] sm:$0xff] %v310
        %s312 = sand.u32 %s104, 1
        %s313 = scalar_lea.sflag [#allocation4], %s312
        %s314 = sand.u32 %s104, 1
        %s315 = smul.addr %s314, 8
        %s316 = scalar_lea.vmem [#allocation7], %s315
        %s317 = sand.u32 %s28, 1
        %s318 = scalar_lea.sflag [#allocation9], %s317
        %s319 = sand.u32 %s130, 1
        %s320 = smul.addr %s319, 8
        %s321 = scalar_lea.vmem [#allocation8], %s320
        %s322 = sand.u32 %s28, 1
        %s323 = scalar_lea.sflag [#allocation9], %s322
        %s324 = sand.u32 %s156, 1
        %s325 = smul.addr %s324, 8
        %s326 = scalar_lea.vmem [#allocation10], %s325
        // Predicated region
        $region41: #{tpu_custom_call.1} parent=27 // pred_check
          %p327 = pneg %p114
        $region42: #{tpu_custom_call.1} parent=27 // pred_check_branch
          %329 = sbr.rel (%p327) target = $region44
        $region43: #{tpu_custom_call.1} parent=27 // pred_region
          %s331 = ssub.s32 128, 128
          %332 = vsyncadd %s313, %s331
          %s333 = smul.addr %s32, 128
          %s334 = scalar_lea.hbm %s2, %s333
          %s336 = sshll.u32 %s316, 4
          %s337 = int_to_ptr.vmem [resolvable:$true] %s336
          %339 = dma.vmem_to_hbm [thread:$0]  %s337, 128, %s334, %s313
        $region44: #{tpu_custom_call.1} parent=27 // pred_fallthru
          _
        // Predicated region
        $region45: #{tpu_custom_call.1} parent=27 // pred_check
          %p340 = pneg %p140
        $region46: #{tpu_custom_call.1} parent=27 // pred_check_branch
          %342 = sbr.rel (%p340) target = $region48
        $region47: #{tpu_custom_call.1} parent=27 // pred_region
          %s344 = ssub.s32 128, 128
          %345 = vsyncadd %s318, %s344
          %s346 = smul.addr %s32, 128
          %s347 = scalar_lea.hbm %s3, %s346
          %s349 = sshll.u32 %s321, 4
          %s350 = int_to_ptr.vmem [resolvable:$true] %s349
          %352 = dma.vmem_to_hbm [thread:$0]  %s350, 128, %s347, %s318
        $region48: #{tpu_custom_call.1} parent=27 // pred_fallthru
          _
        // Predicated region
        $region49: #{tpu_custom_call.1} parent=27 // pred_check
          %p353 = pneg %p166
        $region50: #{tpu_custom_call.1} parent=27 // pred_check_branch
          %355 = sbr.rel (%p353) target = $region52
        $region51: #{tpu_custom_call.1} parent=27 // pred_region
          %s357 = ssub.s32 128, 128
          %358 = vsyncadd %s323, %s357
          %s359 = smul.addr %s32, 128
          %s360 = scalar_lea.hbm %s4, %s359
          %s362 = sshll.u32 %s326, 4
          %s363 = int_to_ptr.vmem [resolvable:$true] %s362
          %365 = dma.vmem_to_hbm [thread:$0]  %s363, 128, %s360, %s323
        $region52: #{tpu_custom_call.1} parent=27 // pred_fallthru
          _
      $region28: #{tpu_custom_call.1} parent=5 // pred_fallthru
        _
      %p366 = scmp.le.s32.totalorder 2, %s23
      // Predicated region
      $region53: #{tpu_custom_call.1} parent=5 // pred_check
        %p367 = pneg %p366
      $region54: #{tpu_custom_call.1} parent=5 // pred_check_branch
        %369 = sbr.rel (%p367) target = $region56
      $region55: #{tpu_custom_call.1} parent=5 // pred_region
        %s370 = ssub.s32 %s23, 2
        // Predicated region
        $region57: #{tpu_custom_call.1} parent=55 // pred_check
          %p371 = pneg %p120
        $region58: #{tpu_custom_call.1} parent=55 // pred_check_branch
          %373 = sbr.rel (%p371) target = $region60
        $region59: #{tpu_custom_call.1} parent=55 // pred_region
          %s374 = sand.u32 %s105, 1
          %s375 = scalar_lea.sflag [#allocation4], %s374
          %s376 = sand.u32 %s105, 1
          %s377 = smul.addr %s376, 8
          %s378 = scalar_lea.vmem [#allocation7], %s377
          %379 = dma.done %s375, 128
        $region60: #{tpu_custom_call.1} parent=55 // pred_fallthru
          _
        // Predicated region
        $region61: #{tpu_custom_call.1} parent=55 // pred_check
          %p380 = pneg %p146
        $region62: #{tpu_custom_call.1} parent=55 // pred_check_branch
          %382 = sbr.rel (%p380) target = $region64
        $region63: #{tpu_custom_call.1} parent=55 // pred_region
          %s383 = sand.u32 %s29, 1
          %s384 = scalar_lea.sflag [#allocation9], %s383
          %s385 = sand.u32 %s131, 1
          %s386 = smul.addr %s385, 8
          %s387 = scalar_lea.vmem [#allocation8], %s386
          %388 = dma.done %s384, 128
        $region64: #{tpu_custom_call.1} parent=55 // pred_fallthru
          _
        // Predicated region
        $region65: #{tpu_custom_call.1} parent=55 // pred_check
          %p389 = pneg %p172
        $region66: #{tpu_custom_call.1} parent=55 // pred_check_branch
          %391 = sbr.rel (%p389) target = $region68
        $region67: #{tpu_custom_call.1} parent=55 // pred_region
          %s392 = sand.u32 %s29, 1
          %s393 = scalar_lea.sflag [#allocation9], %s392
          %s394 = sand.u32 %s157, 1
          %s395 = smul.addr %s394, 8
          %s396 = scalar_lea.vmem [#allocation10], %s395
          %397 = dma.done %s393, 128
        $region68: #{tpu_custom_call.1} parent=55 // pred_fallthru
          _
      $region56: #{tpu_custom_call.1} parent=5 // pred_fallthru
        _
    $region6: #{tpu_custom_call.1} parent=1 // loop_footer
      %s27 = sadd.s32 1, %s23
    $region7: #{tpu_custom_call.1} parent=1 // loop_footer_branch
      %22 = sbr.rel target = $region3
    $region8: #{tpu_custom_call.1} parent=1 // loop_exit
      _
    %398 = vsyncpa [#allocation3], 1
    %s399 = scalar_lea.sflag [#allocation3], 1
    %400 = vsyncpa %s399, 1
    %401 = vsyncpa [#allocation6], 1
    %s402 = scalar_lea.sflag [#allocation6], 1
    %403 = vsyncpa %s402, 1
    %404 = vsyncpa [#allocation4], 1
    %s405 = scalar_lea.sflag [#allocation4], 1
    %406 = vsyncpa %s405, 1
    %407 = vsyncpa [#allocation9], 1
    %s408 = scalar_lea.sflag [#allocation9], 1
    %409 = vsyncpa %s408, 1

</llo_original>
